<compile_context>
chip_gen: v7x
topology: tpu7x:2x2x1
jax: 0.10.0
libtpu: 0.0.40
codegen_flags: <defaults>
</compile_context>

<pallas_src>
import functools

import jax
import jax.numpy as jnp
from jax.experimental import pallas as pl
from jax.experimental.pallas import tpu as pltpu

_LANE = 128     # vreg lane width: matmul / store feature dims padded to multiples of this
_SUBLANE = 8    # f32 sublane count: batch padded to multiples of this


def _round_up(n, m):
    return ((n + m - 1) // m) * m


def _mlp_kernel(apply_bn, n_real,
                x_ref,
                w1_ref, b1_ref, g1_ref, be1_ref,
                w2_ref, b2_ref, g2_ref, be2_ref,
                w3_ref, b3_ref, g3_ref, be3_ref,
                w4_ref, b4_ref,
                o_ref):
    eps = jnp.float32(1e-5)
    mm_dtype = w1_ref.dtype          # matmul operand dtype (bf16 by default)
    b_pad = x_ref.shape[0]
    inv_n = jnp.float32(1.0 / n_real)

    if apply_bn:
        # Row selector for whole-batch BN statistics: 1.0 for real rows, 0.0 for padded
        # rows.  Used as the LHS of a [1,B]x[B,width] matmul, so the batch reduction runs
        # on the MXU (not the XLU) and padding rows are excluded for free.  Hoisted once.
        row_ids = jax.lax.broadcasted_iota(jnp.int32, (1, b_pad), 1)
        sel_row = (row_ids < n_real).astype(jnp.float32)

    def sigmoid(z):
        # == torch.sigmoid; stable for large |z|; tanh runs on the EUP slot.
        return 0.5 * (jnp.tanh(0.5 * z) + 1.0)

    def linear(h, w_ref, b_ref, g_ref=None, be_ref=None):
        # MXU matmul with f32 accumulation.
        z = jnp.dot(h, w_ref[...], preferred_element_type=jnp.float32)
        if apply_bn and g_ref is not None:
            # BatchNorm1d (training mode), single-pass statistics on the MXU:
            #   sum   = sel_row @ z         (only real batch rows contribute)
            #   sumsq = sel_row @ (z*z)
            #   var   = E[z^2] - mean^2, clamped at 0 (biased variance, as torch uses).
            # gamma / rsqrt / mean / beta fold into one per-feature scale & shift so the
            # per-element cost is a single fused mul-add.  The linear bias cancels under
            # BN and is never added.
            s = jnp.dot(sel_row, z, preferred_element_type=jnp.float32)
            sq = jnp.dot(sel_row, z * z, preferred_element_type=jnp.float32)
            mean = s * inv_n
            var = jnp.maximum(sq * inv_n - mean * mean, 0.0)
            scale = g_ref[...] * jax.lax.rsqrt(var + eps)
            shift = be_ref[...] - mean * scale
            return z * scale + shift
        return z + b_ref[...]

    # Input already cast to the matmul dtype (and batch-padded) by the wrapper.
    h = x_ref[...]
    h = sigmoid(linear(h, w1_ref, b1_ref, g1_ref, be1_ref)).astype(mm_dtype)
    h = sigmoid(linear(h, w2_ref, b2_ref, g2_ref, be2_ref)).astype(mm_dtype)
    h = sigmoid(linear(h, w3_ref, b3_ref, g3_ref, be3_ref)).astype(mm_dtype)
    o_ref[...] = sigmoid(linear(h, w4_ref, b4_ref)).astype(o_ref.dtype)


def prepare_params(params, matmul_dtype=jnp.bfloat16):
    """One-time packing of torch-layout params into the kernel layout.

    Linear weights [out, in] -> [in(_pad), out_pad] in `matmul_dtype`; biases / gammas /
    betas -> [1, out_pad] float32 rows.  Padded rows/cols are zero so padded lanes never
    contribute to real features (padded hidden lanes carry sigmoid(0)=0.5 but are
    cancelled by the next layer's zero weight rows).  Call ONCE at init time.
    """
    def pack_w(w, rows_pad, cols_pad):
        w_t = jnp.transpose(w).astype(matmul_dtype)            # [in, out]
        buf = jnp.zeros((rows_pad, cols_pad), matmul_dtype)
        return buf.at[: w_t.shape[0], : w_t.shape[1]].set(w_t)

    def pack_v(v, cols_pad):
        buf = jnp.zeros((1, cols_pad), jnp.float32)
        return buf.at[0, : v.shape[0]].set(v.astype(jnp.float32))

    in_dim = params["w1"].shape[1]
    h = params["w1"].shape[0]
    h2 = params["w2"].shape[0]
    out_dim = params["w4"].shape[0]
    # NOTE: if the model config is tunable, prefer (padded) widths that are multiples of
    # 256 on v6e/v7x (256x256 MXU); 128 only fully fills the MXU on v5e.
    h_p = _round_up(h, _LANE)
    h2_p = _round_up(h2, _LANE)
    o_p = _round_up(out_dim, _LANE)

    return dict(
        w1=pack_w(params["w1"], in_dim, h_p),
        b1=pack_v(params["b1"], h_p), g1=pack_v(params["g1"], h_p), be1=pack_v(params["be1"], h_p),
        w2=pack_w(params["w2"], h_p, h2_p),
        b2=pack_v(params["b2"], h2_p), g2=pack_v(params["g2"], h2_p), be2=pack_v(params["be2"], h2_p),
        w3=pack_w(params["w3"], h2_p, h_p),
        b3=pack_v(params["b3"], h_p), g3=pack_v(params["g3"], h_p), be3=pack_v(params["be3"], h_p),
        w4=pack_w(params["w4"], h_p, o_p),
        b4=pack_v(params["b4"], o_p),
        meta=dict(in_dim=in_dim, hidden=h, hidden2=h2, out_dim=out_dim,
                  h_p=h_p, h2_p=h2_p, o_p=o_p),
    )


def tabular_mlp_forward(x, prepared):
    """x: [B, input_dim] (or [input_dim]) float32.  prepared: output of prepare_params.

    Best throughput is obtained by batching requests: B in the hundreds keeps the MXU
    M-dimension busy; small B is latency-bound regardless of in-kernel tuning.
    """
    meta = prepared["meta"]
    if x.ndim == 1:                       # mirrors `x.unsqueeze(0)` in the torch code
        x = x[None, :]
    n_real = x.shape[0]
    apply_bn = n_real > 1                 # static shape -> trace-time decision
    b_pad = _round_up(n_real, _SUBLANE)

    mm_dtype = prepared["w1"].dtype
    in_dim = meta["in_dim"]
    out_dim = meta["out_dim"]
    h_p, h2_p, o_p = meta["h_p"], meta["h2_p"], meta["o_p"]

    # Pre-cast + sublane-pad the input once in the wrapper (padding rows are zero, so
    # they contribute nothing to the first layer and are masked out of BN statistics).
    if b_pad == n_real:
        x_in = x.astype(mm_dtype)
    else:
        x_in = jnp.zeros((b_pad, in_dim), mm_dtype).at[:n_real, :].set(x.astype(mm_dtype))

    args = (
        x_in,
        prepared["w1"], prepared["b1"], prepared["g1"], prepared["be1"],
        prepared["w2"], prepared["b2"], prepared["g2"], prepared["be2"],
        prepared["w3"], prepared["b3"], prepared["g3"], prepared["be3"],
        prepared["w4"], prepared["b4"],
    )

    # --- compiler hints -------------------------------------------------------------
    # VMEM budget derived from the actual chip (64 MiB/TC on v7x, 128 MiB on v5e/v6e),
    # with ~28% headroom left for Mosaic internal scratch.
    try:
        info = pltpu.get_tpu_info()
        vmem_cap = int(getattr(info, "vmem_capacity_bytes", 64 << 20))
    except Exception:                                  # pragma: no cover - conservative
        vmem_cap = 64 << 20
    mm_bytes = jnp.dtype(mm_dtype).itemsize
    w_bytes = (in_dim * h_p + h_p * h2_p + h2_p * h_p + h_p * o_p) * mm_bytes \
        + (6 * h_p + 3 * h2_p + o_p) * 4                       # f32 bias/gamma/beta rows
    io_bytes = b_pad * in_dim * mm_bytes + b_pad * o_p * 4
    act_bytes = 6 * b_pad * max(h_p, h2_p) * 4                 # generous: live f32 temps
    ceiling = min(int(vmem_cap * 0.72), 100 << 20)
    vmem_limit = int(min(max(w_bytes + io_bytes + act_bytes + (2 << 20), 16 << 20), ceiling))

    # Cost hint counts *padded* work actually issued (incl. BN statistic matmuls).
    mxu_flops = 2 * b_pad * (in_dim * h_p + h_p * h2_p + h2_p * h_p + h_p * o_p)
    if apply_bn:
        mxu_flops += 2 * 2 * b_pad * (h_p + h2_p + h_p)        # sum + sumsq per BN layer
    cost = pl.CostEstimate(
        flops=int(mxu_flops),
        transcendentals=int(b_pad * (h_p + h2_p + h_p + o_p)),  # one tanh per sigmoid
        bytes_accessed=int(w_bytes + io_bytes),
    )

    vmem_spec = pl.BlockSpec(memory_space=pltpu.MemorySpace.VMEM)
    kernel = functools.partial(_mlp_kernel, apply_bn, n_real)

    out_padded = pl.pallas_call(
        kernel,
        out_shape=jax.ShapeDtypeStruct((b_pad, o_p), jnp.float32),
        in_specs=[vmem_spec] * len(args),
        out_specs=vmem_spec,
        compiler_params=pltpu.CompilerParams(vmem_limit_bytes=vmem_limit),
        cost_estimate=cost,
    )(*args)

    return out_padded[:n_real, :out_dim]   # drop batch / lane padding outside the kernel


def init_params(key, input_dim, hidden_dim, output_dim):
    """Deterministic init mimicking nn.Linear defaults (uniform +/- 1/sqrt(fan_in)),
    BatchNorm gamma=1, beta=0.  Stored in torch layout ([out, in] weights)."""
    ks = jax.random.split(key, 8)

    def linear(kw, kb, fan_in, fan_out):
        bound = 1.0 / jnp.sqrt(fan_in)
        w = jax.random.uniform(kw, (fan_out, fan_in), jnp.float32, -bound, bound)
        b = jax.random.uniform(kb, (fan_out,), jnp.float32, -bound, bound)
        return w, b

    w1, b1 = linear(ks[0], ks[1], input_dim, hidden_dim)
    w2, b2 = linear(ks[2], ks[3], hidden_dim, 2 * hidden_dim)
    w3, b3 = linear(ks[4], ks[5], 2 * hidden_dim, hidden_dim)
    w4, b4 = linear(ks[6], ks[7], hidden_dim, output_dim)

    return dict(
        w1=w1, b1=b1, g1=jnp.ones((hidden_dim,), jnp.float32), be1=jnp.zeros((hidden_dim,), jnp.float32),
        w2=w2, b2=b2, g2=jnp.ones((2 * hidden_dim,), jnp.float32), be2=jnp.zeros((2 * hidden_dim,), jnp.float32),
        w3=w3, b3=b3, g3=jnp.ones((hidden_dim,), jnp.float32), be3=jnp.zeros((hidden_dim,), jnp.float32),
        w4=w4, b4=b4,
    )


def _reference_forward(x, params):
    """Pure-JAX f32 reference matching the PyTorch forward (training-mode BatchNorm).
    torch BatchNorm1d also updates running stats as a side effect; only the
    normalization math is reproduced here (pure forward)."""
    if x.ndim == 1:
        x = x[None, :]

    def bn(z, g, be):
        mean = jnp.mean(z, axis=0, keepdims=True)
        var = jnp.mean(jnp.square(z - mean), axis=0, keepdims=True)
        return (z - mean) * jax.lax.rsqrt(var + 1e-5) * g + be

    def layer(h, w, b, g=None, be=None):
        z = h @ w.T + b
        if g is not None and h.shape[0] > 1:
            z = bn(z, g, be)
        return jax.nn.sigmoid(z)

    h = layer(x, params["w1"], params["b1"], params["g1"], params["be1"])
    h = layer(h, params["w2"], params["b2"], params["g2"], params["be2"])
    h = layer(h, params["w3"], params["b3"], params["g3"], params["be3"])
    return layer(h, params["w4"], params["b4"])


if __name__ == "__main__":
    input_dim, hidden_dim, output_dim = 16, 32, 8
    batch = 8

    key = jax.random.PRNGKey(0)
    k_params, k_x = jax.random.split(key)

    params = init_params(k_params, input_dim, hidden_dim, output_dim)
    prepared = prepare_params(params)     # one-time: transpose + lane-pad + bf16 cast
    x = jax.random.normal(k_x, (batch, input_dim), dtype=jnp.float32)

    tol = 7.5e-2                          # bf16 matmul operands vs f32 reference

    # aligned batch (BN active)
    out = jax.block_until_ready(tabular_mlp_forward(x, prepared))
    ref = _reference_forward(x, params)
    assert out.shape == (batch, output_dim)
    assert bool(jnp.all(jnp.isfinite(out)))
    assert bool(jnp.all((out >= 0.0) & (out <= 1.0)))          # sigmoid output range
    assert bool(jnp.max(jnp.abs(out - ref)) < tol)

    # unaligned batch -> exercises the sublane-padded / masked-statistics path
    out5 = jax.block_until_ready(tabular_mlp_forward(x[:5], prepared))
    ref5 = _reference_forward(x[:5], params)
    assert out5.shape == (5, output_dim)
    assert bool(jnp.max(jnp.abs(out5 - ref5)) < tol)

    # batch-size-1 path (BatchNorm skipped, exactly as in the PyTorch forward)
    out1 = jax.block_until_ready(tabular_mlp_forward(x[0], prepared))
    ref1 = _reference_forward(x[0], params)
    assert out1.shape == (1, output_dim)
    assert bool(jnp.max(jnp.abs(out1 - ref1)) < tol)

    print("KERNEL_OK")
</pallas_src>

<mosaic_0001>
module attributes {stable_mosaic.version = 11 : i64} {
  func.func @_mlp_kernel(%arg0: memref<8x16xbf16, #tpu.memory_space<vmem>>, %arg1: memref<16x128xbf16, #tpu.memory_space<vmem>>, %arg2: memref<1x128xf32, #tpu.memory_space<vmem>>, %arg3: memref<1x128xf32, #tpu.memory_space<vmem>>, %arg4: memref<1x128xf32, #tpu.memory_space<vmem>>, %arg5: memref<128x128xbf16, #tpu.memory_space<vmem>>, %arg6: memref<1x128xf32, #tpu.memory_space<vmem>>, %arg7: memref<1x128xf32, #tpu.memory_space<vmem>>, %arg8: memref<1x128xf32, #tpu.memory_space<vmem>>, %arg9: memref<128x128xbf16, #tpu.memory_space<vmem>>, %arg10: memref<1x128xf32, #tpu.memory_space<vmem>>, %arg11: memref<1x128xf32, #tpu.memory_space<vmem>>, %arg12: memref<1x128xf32, #tpu.memory_space<vmem>>, %arg13: memref<128x128xbf16, #tpu.memory_space<vmem>>, %arg14: memref<1x128xf32, #tpu.memory_space<vmem>>, %arg15: memref<8x128xf32, #tpu.memory_space<vmem>>) attributes {dimension_semantics = [], scalar_prefetch = 0 : i64, scratch_operands = 0 : i64, tpu.core_type = #tpu.core_type<tc>} {
    %0 = tpu.iota {dimensions = array<i32: 1>} : vector<1x8xi32>
    %c8_i32 = arith.constant 8 : i32
    %1 = vector.broadcast %c8_i32 : i32 to vector<1x8xi32>
    %2 = arith.cmpi slt, %0, %1 : vector<1x8xi32>
    %3 = arith.extui %2 : vector<1x8xi1> to vector<1x8xi32>
    %4 = arith.sitofp %3 : vector<1x8xi32> to vector<1x8xf32>
    %c0 = arith.constant 0 : index
    %c0_0 = arith.constant 0 : index
    %5 = vector.load %arg0[%c0, %c0_0] : memref<8x16xbf16, #tpu.memory_space<vmem>>, vector<8x16xbf16>
    %c0_1 = arith.constant 0 : index
    %c0_2 = arith.constant 0 : index
    %6 = vector.load %arg1[%c0_1, %c0_2] : memref<16x128xbf16, #tpu.memory_space<vmem>>, vector<16x128xbf16>
    %cst = arith.constant dense<0.000000e+00> : vector<8x128xf32>
    %7 = tpu.matmul %5, %6, %cst {dimension_numbers = #tpu.dot_dimension_numbers<[1], [0], [0], [1], [0, 0, 1, 1], [], []>} : vector<8x16xbf16>, vector<16x128xbf16>, vector<8x128xf32> -> vector<8x128xf32>
    %cst_3 = arith.constant dense<0.000000e+00> : vector<1x128xf32>
    %8 = tpu.matmul %4, %7, %cst_3 {dimension_numbers = #tpu.dot_dimension_numbers<[1], [0], [0], [1], [0, 0, 1, 1], [], []>} : vector<1x8xf32>, vector<8x128xf32>, vector<1x128xf32> -> vector<1x128xf32>
    %9 = arith.mulf %7, %7 : vector<8x128xf32>
    %cst_4 = arith.constant dense<0.000000e+00> : vector<1x128xf32>
    %10 = tpu.matmul %4, %9, %cst_4 {dimension_numbers = #tpu.dot_dimension_numbers<[1], [0], [0], [1], [0, 0, 1, 1], [], []>} : vector<1x8xf32>, vector<8x128xf32>, vector<1x128xf32> -> vector<1x128xf32>
    %cst_5 = arith.constant 1.250000e-01 : f32
    %11 = vector.broadcast %cst_5 : f32 to vector<1x128xf32>
    %12 = arith.mulf %8, %11 : vector<1x128xf32>
    %cst_6 = arith.constant 1.250000e-01 : f32
    %13 = vector.broadcast %cst_6 : f32 to vector<1x128xf32>
    %14 = arith.mulf %10, %13 : vector<1x128xf32>
    %15 = arith.mulf %12, %12 : vector<1x128xf32>
    %16 = arith.subf %14, %15 : vector<1x128xf32>
    %cst_7 = arith.constant 0.000000e+00 : f32
    %17 = vector.broadcast %cst_7 : f32 to vector<1x128xf32>
    %18 = arith.maximumf %16, %17 : vector<1x128xf32>
    %c0_8 = arith.constant 0 : index
    %c0_9 = arith.constant 0 : index
    %19 = vector.load %arg3[%c0_8, %c0_9] : memref<1x128xf32, #tpu.memory_space<vmem>>, vector<1x128xf32>
    %cst_10 = arith.constant 9.99999974E-6 : f32
    %20 = vector.broadcast %cst_10 : f32 to vector<1x128xf32>
    %21 = arith.addf %18, %20 : vector<1x128xf32>
    %22 = math.rsqrt %21 : vector<1x128xf32>
    %23 = arith.mulf %19, %22 : vector<1x128xf32>
    %c0_11 = arith.constant 0 : index
    %c0_12 = arith.constant 0 : index
    %24 = vector.load %arg4[%c0_11, %c0_12] : memref<1x128xf32, #tpu.memory_space<vmem>>, vector<1x128xf32>
    %25 = arith.mulf %12, %23 : vector<1x128xf32>
    %26 = arith.subf %24, %25 : vector<1x128xf32>
    %27 = vector.broadcast %23 : vector<1x128xf32> to vector<8x128xf32>
    %28 = arith.mulf %7, %27 : vector<8x128xf32>
    %29 = vector.broadcast %26 : vector<1x128xf32> to vector<8x128xf32>
    %30 = arith.addf %28, %29 : vector<8x128xf32>
    %cst_13 = arith.constant 5.000000e-01 : f32
    %31 = vector.broadcast %cst_13 : f32 to vector<8x128xf32>
    %32 = arith.mulf %31, %30 : vector<8x128xf32>
    %33 = math.tanh %32 : vector<8x128xf32>
    %cst_14 = arith.constant 1.000000e+00 : f32
    %34 = vector.broadcast %cst_14 : f32 to vector<8x128xf32>
    %35 = arith.addf %33, %34 : vector<8x128xf32>
    %cst_15 = arith.constant 5.000000e-01 : f32
    %36 = vector.broadcast %cst_15 : f32 to vector<8x128xf32>
    %37 = arith.mulf %36, %35 : vector<8x128xf32>
    %38 = arith.truncf %37 : vector<8x128xf32> to vector<8x128xbf16>
    %c0_16 = arith.constant 0 : index
    %c0_17 = arith.constant 0 : index
    %39 = vector.load %arg5[%c0_16, %c0_17] : memref<128x128xbf16, #tpu.memory_space<vmem>>, vector<128x128xbf16>
    %cst_18 = arith.constant dense<0.000000e+00> : vector<8x128xf32>
    %40 = tpu.matmul %38, %39, %cst_18 {dimension_numbers = #tpu.dot_dimension_numbers<[1], [0], [0], [1], [0, 0, 1, 1], [], []>} : vector<8x128xbf16>, vector<128x128xbf16>, vector<8x128xf32> -> vector<8x128xf32>
    %cst_19 = arith.constant dense<0.000000e+00> : vector<1x128xf32>
    %41 = tpu.matmul %4, %40, %cst_19 {dimension_numbers = #tpu.dot_dimension_numbers<[1], [0], [0], [1], [0, 0, 1, 1], [], []>} : vector<1x8xf32>, vector<8x128xf32>, vector<1x128xf32> -> vector<1x128xf32>
    %42 = arith.mulf %40, %40 : vector<8x128xf32>
    %cst_20 = arith.constant dense<0.000000e+00> : vector<1x128xf32>
    %43 = tpu.matmul %4, %42, %cst_20 {dimension_numbers = #tpu.dot_dimension_numbers<[1], [0], [0], [1], [0, 0, 1, 1], [], []>} : vector<1x8xf32>, vector<8x128xf32>, vector<1x128xf32> -> vector<1x128xf32>
    %cst_21 = arith.constant 1.250000e-01 : f32
    %44 = vector.broadcast %cst_21 : f32 to vector<1x128xf32>
    %45 = arith.mulf %41, %44 : vector<1x128xf32>
    %cst_22 = arith.constant 1.250000e-01 : f32
    %46 = vector.broadcast %cst_22 : f32 to vector<1x128xf32>
    %47 = arith.mulf %43, %46 : vector<1x128xf32>
    %48 = arith.mulf %45, %45 : vector<1x128xf32>
    %49 = arith.subf %47, %48 : vector<1x128xf32>
    %cst_23 = arith.constant 0.000000e+00 : f32
    %50 = vector.broadcast %cst_23 : f32 to vector<1x128xf32>
    %51 = arith.maximumf %49, %50 : vector<1x128xf32>
    %c0_24 = arith.constant 0 : index
    %c0_25 = arith.constant 0 : index
    %52 = vector.load %arg7[%c0_24, %c0_25] : memref<1x128xf32, #tpu.memory_space<vmem>>, vector<1x128xf32>
    %cst_26 = arith.constant 9.99999974E-6 : f32
    %53 = vector.broadcast %cst_26 : f32 to vector<1x128xf32>
    %54 = arith.addf %51, %53 : vector<1x128xf32>
    %55 = math.rsqrt %54 : vector<1x128xf32>
    %56 = arith.mulf %52, %55 : vector<1x128xf32>
    %c0_27 = arith.constant 0 : index
    %c0_28 = arith.constant 0 : index
    %57 = vector.load %arg8[%c0_27, %c0_28] : memref<1x128xf32, #tpu.memory_space<vmem>>, vector<1x128xf32>
    %58 = arith.mulf %45, %56 : vector<1x128xf32>
    %59 = arith.subf %57, %58 : vector<1x128xf32>
    %60 = vector.broadcast %56 : vector<1x128xf32> to vector<8x128xf32>
    %61 = arith.mulf %40, %60 : vector<8x128xf32>
    %62 = vector.broadcast %59 : vector<1x128xf32> to vector<8x128xf32>
    %63 = arith.addf %61, %62 : vector<8x128xf32>
    %cst_29 = arith.constant 5.000000e-01 : f32
    %64 = vector.broadcast %cst_29 : f32 to vector<8x128xf32>
    %65 = arith.mulf %64, %63 : vector<8x128xf32>
    %66 = math.tanh %65 : vector<8x128xf32>
    %cst_30 = arith.constant 1.000000e+00 : f32
    %67 = vector.broadcast %cst_30 : f32 to vector<8x128xf32>
    %68 = arith.addf %66, %67 : vector<8x128xf32>
    %cst_31 = arith.constant 5.000000e-01 : f32
    %69 = vector.broadcast %cst_31 : f32 to vector<8x128xf32>
    %70 = arith.mulf %69, %68 : vector<8x128xf32>
    %71 = arith.truncf %70 : vector<8x128xf32> to vector<8x128xbf16>
    %c0_32 = arith.constant 0 : index
    %c0_33 = arith.constant 0 : index
    %72 = vector.load %arg9[%c0_32, %c0_33] : memref<128x128xbf16, #tpu.memory_space<vmem>>, vector<128x128xbf16>
    %cst_34 = arith.constant dense<0.000000e+00> : vector<8x128xf32>
    %73 = tpu.matmul %71, %72, %cst_34 {dimension_numbers = #tpu.dot_dimension_numbers<[1], [0], [0], [1], [0, 0, 1, 1], [], []>} : vector<8x128xbf16>, vector<128x128xbf16>, vector<8x128xf32> -> vector<8x128xf32>
    %cst_35 = arith.constant dense<0.000000e+00> : vector<1x128xf32>
    %74 = tpu.matmul %4, %73, %cst_35 {dimension_numbers = #tpu.dot_dimension_numbers<[1], [0], [0], [1], [0, 0, 1, 1], [], []>} : vector<1x8xf32>, vector<8x128xf32>, vector<1x128xf32> -> vector<1x128xf32>
    %75 = arith.mulf %73, %73 : vector<8x128xf32>
    %cst_36 = arith.constant dense<0.000000e+00> : vector<1x128xf32>
    %76 = tpu.matmul %4, %75, %cst_36 {dimension_numbers = #tpu.dot_dimension_numbers<[1], [0], [0], [1], [0, 0, 1, 1], [], []>} : vector<1x8xf32>, vector<8x128xf32>, vector<1x128xf32> -> vector<1x128xf32>
    %cst_37 = arith.constant 1.250000e-01 : f32
    %77 = vector.broadcast %cst_37 : f32 to vector<1x128xf32>
    %78 = arith.mulf %74, %77 : vector<1x128xf32>
    %cst_38 = arith.constant 1.250000e-01 : f32
    %79 = vector.broadcast %cst_38 : f32 to vector<1x128xf32>
    %80 = arith.mulf %76, %79 : vector<1x128xf32>
    %81 = arith.mulf %78, %78 : vector<1x128xf32>
    %82 = arith.subf %80, %81 : vector<1x128xf32>
    %cst_39 = arith.constant 0.000000e+00 : f32
    %83 = vector.broadcast %cst_39 : f32 to vector<1x128xf32>
    %84 = arith.maximumf %82, %83 : vector<1x128xf32>
    %c0_40 = arith.constant 0 : index
    %c0_41 = arith.constant 0 : index
    %85 = vector.load %arg11[%c0_40, %c0_41] : memref<1x128xf32, #tpu.memory_space<vmem>>, vector<1x128xf32>
    %cst_42 = arith.constant 9.99999974E-6 : f32
    %86 = vector.broadcast %cst_42 : f32 to vector<1x128xf32>
    %87 = arith.addf %84, %86 : vector<1x128xf32>
    %88 = math.rsqrt %87 : vector<1x128xf32>
    %89 = arith.mulf %85, %88 : vector<1x128xf32>
    %c0_43 = arith.constant 0 : index
    %c0_44 = arith.constant 0 : index
    %90 = vector.load %arg12[%c0_43, %c0_44] : memref<1x128xf32, #tpu.memory_space<vmem>>, vector<1x128xf32>
    %91 = arith.mulf %78, %89 : vector<1x128xf32>
    %92 = arith.subf %90, %91 : vector<1x128xf32>
    %93 = vector.broadcast %89 : vector<1x128xf32> to vector<8x128xf32>
    %94 = arith.mulf %73, %93 : vector<8x128xf32>
    %95 = vector.broadcast %92 : vector<1x128xf32> to vector<8x128xf32>
    %96 = arith.addf %94, %95 : vector<8x128xf32>
    %cst_45 = arith.constant 5.000000e-01 : f32
    %97 = vector.broadcast %cst_45 : f32 to vector<8x128xf32>
    %98 = arith.mulf %97, %96 : vector<8x128xf32>
    %99 = math.tanh %98 : vector<8x128xf32>
    %cst_46 = arith.constant 1.000000e+00 : f32
    %100 = vector.broadcast %cst_46 : f32 to vector<8x128xf32>
    %101 = arith.addf %99, %100 : vector<8x128xf32>
    %cst_47 = arith.constant 5.000000e-01 : f32
    %102 = vector.broadcast %cst_47 : f32 to vector<8x128xf32>
    %103 = arith.mulf %102, %101 : vector<8x128xf32>
    %104 = arith.truncf %103 : vector<8x128xf32> to vector<8x128xbf16>
    %c0_48 = arith.constant 0 : index
    %c0_49 = arith.constant 0 : index
    %105 = vector.load %arg13[%c0_48, %c0_49] : memref<128x128xbf16, #tpu.memory_space<vmem>>, vector<128x128xbf16>
    %cst_50 = arith.constant dense<0.000000e+00> : vector<8x128xf32>
    %106 = tpu.matmul %104, %105, %cst_50 {dimension_numbers = #tpu.dot_dimension_numbers<[1], [0], [0], [1], [0, 0, 1, 1], [], []>} : vector<8x128xbf16>, vector<128x128xbf16>, vector<8x128xf32> -> vector<8x128xf32>
    %c0_51 = arith.constant 0 : index
    %c0_52 = arith.constant 0 : index
    %107 = vector.load %arg14[%c0_51, %c0_52] : memref<1x128xf32, #tpu.memory_space<vmem>>, vector<1x128xf32>
    %108 = vector.broadcast %107 : vector<1x128xf32> to vector<8x128xf32>
    %109 = arith.addf %106, %108 : vector<8x128xf32>
    %cst_53 = arith.constant 5.000000e-01 : f32
    %110 = vector.broadcast %cst_53 : f32 to vector<8x128xf32>
    %111 = arith.mulf %110, %109 : vector<8x128xf32>
    %112 = math.tanh %111 : vector<8x128xf32>
    %cst_54 = arith.constant 1.000000e+00 : f32
    %113 = vector.broadcast %cst_54 : f32 to vector<8x128xf32>
    %114 = arith.addf %112, %113 : vector<8x128xf32>
    %cst_55 = arith.constant 5.000000e-01 : f32
    %115 = vector.broadcast %cst_55 : f32 to vector<8x128xf32>
    %116 = arith.mulf %115, %114 : vector<8x128xf32>
    %c0_56 = arith.constant 0 : index
    %c0_57 = arith.constant 0 : index
    %117 = vector.load %arg15[%c0_56, %c0_57] : memref<8x128xf32, #tpu.memory_space<vmem>>, vector<8x128xf32>
    tpu.vector_store %arg15[%c0_56, %c0_57], %116 {strides = array<i32>} : memref<8x128xf32, #tpu.memory_space<vmem>>, vector<8x128xf32>,
    return
  }
}

</mosaic_0001>

<llo_original>
// kernel: tpu_custom_call.1
$region0: #{tpu_custom_call.1}
  #allocation0 [shape = 'u32[]', space=smem, size = 0x4, offset = 0x4, fixed_abs, tag = 'smem constant byte address 0x4 - core index']
  #allocation1 [shape = 'u32[144,128]{1,0:T(1,128)}', space=vmem, size = 0x12000, scoped, tag = 'internal scratch']
  %s0 = inlined_call_operand.hbm [shape: bf16[8,16], index: 0, kind: input, shape index: {}]
  %s1 = inlined_call_operand.hbm [shape: bf16[16,128], index: 1, kind: input, shape index: {}]
  %s2 = inlined_call_operand.vmem [shape: f32[1,128], index: 2, kind: input, shape index: {}]
  %s3 = inlined_call_operand.vmem [shape: f32[1,128], index: 3, kind: input, shape index: {}]
  %s4 = inlined_call_operand.vmem [shape: f32[1,128], index: 4, kind: input, shape index: {}]
  %s5 = inlined_call_operand.hbm [shape: bf16[128,128], index: 5, kind: input, shape index: {}]
  %s6 = inlined_call_operand.vmem [shape: f32[1,128], index: 6, kind: input, shape index: {}]
  %s7 = inlined_call_operand.vmem [shape: f32[1,128], index: 7, kind: input, shape index: {}]
  %s8 = inlined_call_operand.vmem [shape: f32[1,128], index: 8, kind: input, shape index: {}]
  %s9 = inlined_call_operand.hbm [shape: bf16[128,128], index: 9, kind: input, shape index: {}]
  %s10 = inlined_call_operand.vmem [shape: f32[1,128], index: 10, kind: input, shape index: {}]
  %s11 = inlined_call_operand.vmem [shape: f32[1,128], index: 11, kind: input, shape index: {}]
  %s12 = inlined_call_operand.vmem [shape: f32[1,128], index: 12, kind: input, shape index: {}]
  %s13 = inlined_call_operand.hbm [shape: bf16[128,128], index: 13, kind: input, shape index: {}]
  %s14 = inlined_call_operand.vmem [shape: f32[1,128], index: 14, kind: input, shape index: {}]
  %s15 = inlined_call_operand.hbm [shape: f32[8,128], index: 15, kind: output, shape index: {}]
  %s16 = sld [smem:[#allocation0]]
  $region90: #{tpu_custom_call.1} parent=0
    _
  %s18 = ssub.s32 1, %s16
  %s19 = scalar_select 0, %s18, %s16
  $region1: #{tpu_custom_call.1} parent=0
    #allocation2 [shape = 'u8[2048]{0}', space=vmem, size = 0x800, scoped, tag = 'input window, operand 0, single buffered']
    #allocation3 [shape = 's32[1]{0}', space=sflag, size = 0x4, scoped, tag = 'scoped memory for tpu_custom_call.1']
    #allocation4 [shape = 's32[1]{0}', space=sflag, size = 0x4, scoped, tag = 'scoped memory for tpu_custom_call.1']
    #allocation5 [shape = 'u8[4096]{0}', space=vmem, size = 0x1000, scoped, tag = 'input window, operand 1, single buffered']
    #allocation6 [shape = 's32[1]{0}', space=sflag, size = 0x4, scoped, tag = 'scoped memory for tpu_custom_call.1']
    #allocation7 [shape = 'u8[32768]{0}', space=vmem, size = 0x8000, scoped, tag = 'input window, operand 5, single buffered']
    #allocation8 [shape = 'u8[32768]{0}', space=vmem, size = 0x8000, scoped, tag = 'input window, operand 9, single buffered']
    #allocation9 [shape = 's32[1]{0}', space=sflag, size = 0x4, scoped, tag = 'scoped memory for tpu_custom_call.1']
    #allocation10 [shape = 'u8[32768]{0}', space=vmem, size = 0x8000, scoped, tag = 'input window, operand 13, single buffered']
    #allocation11 [shape = 'u8[4096]{0}', space=vmem, size = 0x1000, scoped, tag = 'output window, operand 0, single buffered']
    %20 = vsyncpa [#allocation3], 0
    %21 = vsyncpa [#allocation6], 0
    %22 = vsyncpa [#allocation9], 0
    %23 = vsyncpa [#allocation4], 0
    // Predicated region
    $region2: #{tpu_custom_call.1} parent=1 // pred_check
      _
    $region3: #{tpu_custom_call.1} parent=1 // pred_check_branch
      %25 = sbr.rel (0) target = $region5
    $region4: #{tpu_custom_call.1} parent=1 // pred_region
      %s27 = ssub.s32 64, 64
      %28 = vsyncadd [#allocation3], %s27
      %s30 = sshll.u32 [#allocation2], 4
      %s31 = int_to_ptr.vmem [resolvable:$true] %s30
      %33 = dma.hbm_to_vmem [thread:$0]  %s0, 64, %s31, [#allocation3]
    $region5: #{tpu_custom_call.1} parent=1 // pred_fallthru
      _
    // Predicated region
    $region6: #{tpu_custom_call.1} parent=1 // pred_check
      _
    $region7: #{tpu_custom_call.1} parent=1 // pred_check_branch
      %35 = sbr.rel (0) target = $region9
    $region8: #{tpu_custom_call.1} parent=1 // pred_region
      %s37 = ssub.s32 128, 128
      %38 = vsyncadd [#allocation6], %s37
      %s39 = sshll.u32 [#allocation5], 4
      %s40 = int_to_ptr.vmem [resolvable:$true] %s39
      %45 = dma.hbm_to_vmem [thread:$0]  %s1, 128, %s40, [#allocation6], 64, 64, 4
    $region9: #{tpu_custom_call.1} parent=1 // pred_fallthru
      _
    // Predicated region
    $region10: #{tpu_custom_call.1} parent=1 // pred_check
      _
    $region11: #{tpu_custom_call.1} parent=1 // pred_check_branch
      %47 = sbr.rel (0) target = $region13
    $region12: #{tpu_custom_call.1} parent=1 // pred_region
      _
    $region13: #{tpu_custom_call.1} parent=1 // pred_fallthru
      _
    // Predicated region
    $region14: #{tpu_custom_call.1} parent=1 // pred_check
      _
    $region15: #{tpu_custom_call.1} parent=1 // pred_check_branch
      %49 = sbr.rel (0) target = $region17
    $region16: #{tpu_custom_call.1} parent=1 // pred_region
      _
    $region17: #{tpu_custom_call.1} parent=1 // pred_fallthru
      _
    // Predicated region
    $region18: #{tpu_custom_call.1} parent=1 // pred_check
      _
    $region19: #{tpu_custom_call.1} parent=1 // pred_check_branch
      %51 = sbr.rel (0) target = $region21
    $region20: #{tpu_custom_call.1} parent=1 // pred_region
      _
    $region21: #{tpu_custom_call.1} parent=1 // pred_fallthru
      _
    // Predicated region
    $region22: #{tpu_custom_call.1} parent=1 // pred_check
      _
    $region23: #{tpu_custom_call.1} parent=1 // pred_check_branch
      %53 = sbr.rel (0) target = $region25
    $region24: #{tpu_custom_call.1} parent=1 // pred_region
      %s55 = ssub.s32 1024, 1024
      %56 = vsyncadd [#allocation6], %s55
      %s57 = sshll.u32 [#allocation7], 4
      %s58 = int_to_ptr.vmem [resolvable:$true] %s57
      %63 = dma.hbm_to_vmem [thread:$0]  %s5, 1024, %s58, [#allocation6], 64, 64, 4
    $region25: #{tpu_custom_call.1} parent=1 // pred_fallthru
      _
    // Predicated region
    $region26: #{tpu_custom_call.1} parent=1 // pred_check
      _
    $region27: #{tpu_custom_call.1} parent=1 // pred_check_branch
      %65 = sbr.rel (0) target = $region29
    $region28: #{tpu_custom_call.1} parent=1 // pred_region
      _
    $region29: #{tpu_custom_call.1} parent=1 // pred_fallthru
      _
    // Predicated region
    $region30: #{tpu_custom_call.1} parent=1 // pred_check
      _
    $region31: #{tpu_custom_call.1} parent=1 // pred_check_branch
      %67 = sbr.rel (0) target = $region33
    $region32: #{tpu_custom_call.1} parent=1 // pred_region
      _
    $region33: #{tpu_custom_call.1} parent=1 // pred_fallthru
      _
    // Predicated region
    $region34: #{tpu_custom_call.1} parent=1 // pred_check
      _
    $region35: #{tpu_custom_call.1} parent=1 // pred_check_branch
      %69 = sbr.rel (0) target = $region37
    $region36: #{tpu_custom_call.1} parent=1 // pred_region
      _
    $region37: #{tpu_custom_call.1} parent=1 // pred_fallthru
      _
    // Predicated region
    $region38: #{tpu_custom_call.1} parent=1 // pred_check
      _
    $region39: #{tpu_custom_call.1} parent=1 // pred_check_branch
      %71 = sbr.rel (0) target = $region41
    $region40: #{tpu_custom_call.1} parent=1 // pred_region
      %s73 = ssub.s32 1024, 1024
      %74 = vsyncadd [#allocation9], %s73
      %s75 = sshll.u32 [#allocation8], 4
      %s76 = int_to_ptr.vmem [resolvable:$true] %s75
      %81 = dma.hbm_to_vmem [thread:$0]  %s9, 1024, %s76, [#allocation9], 64, 64, 4
    $region41: #{tpu_custom_call.1} parent=1 // pred_fallthru
      _
    // Predicated region
    $region42: #{tpu_custom_call.1} parent=1 // pred_check
      _
    $region43: #{tpu_custom_call.1} parent=1 // pred_check_branch
      %83 = sbr.rel (0) target = $region45
    $region44: #{tpu_custom_call.1} parent=1 // pred_region
      _
    $region45: #{tpu_custom_call.1} parent=1 // pred_fallthru
      _
    // Predicated region
    $region46: #{tpu_custom_call.1} parent=1 // pred_check
      _
    $region47: #{tpu_custom_call.1} parent=1 // pred_check_branch
      %85 = sbr.rel (0) target = $region49
    $region48: #{tpu_custom_call.1} parent=1 // pred_region
      _
    $region49: #{tpu_custom_call.1} parent=1 // pred_fallthru
      _
    // Predicated region
    $region50: #{tpu_custom_call.1} parent=1 // pred_check
      _
    $region51: #{tpu_custom_call.1} parent=1 // pred_check_branch
      %87 = sbr.rel (0) target = $region53
    $region52: #{tpu_custom_call.1} parent=1 // pred_region
      _
    $region53: #{tpu_custom_call.1} parent=1 // pred_fallthru
      _
    // Predicated region
    $region54: #{tpu_custom_call.1} parent=1 // pred_check
      _
    $region55: #{tpu_custom_call.1} parent=1 // pred_check_branch
      %89 = sbr.rel (0) target = $region57
    $region56: #{tpu_custom_call.1} parent=1 // pred_region
      %s91 = ssub.s32 1024, 1024
      %92 = vsyncadd [#allocation9], %s91
      %s93 = sshll.u32 [#allocation10], 4
      %s94 = int_to_ptr.vmem [resolvable:$true] %s93
      %99 = dma.hbm_to_vmem [thread:$0]  %s13, 1024, %s94, [#allocation9], 64, 64, 4
    $region57: #{tpu_custom_call.1} parent=1 // pred_fallthru
      _
    // Predicated region
    $region58: #{tpu_custom_call.1} parent=1 // pred_check
      _
    $region59: #{tpu_custom_call.1} parent=1 // pred_check_branch
      %101 = sbr.rel (0) target = $region61
    $region60: #{tpu_custom_call.1} parent=1 // pred_region
      _
    $region61: #{tpu_custom_call.1} parent=1 // pred_fallthru
      _
    // Predicated region
    $region62: #{tpu_custom_call.1} parent=1 // pred_check
      _
    $region63: #{tpu_custom_call.1} parent=1 // pred_check_branch
      %103 = sbr.rel (0) target = $region65
    $region64: #{tpu_custom_call.1} parent=1 // pred_region
      %104 = dma.done [#allocation3], 64
    $region65: #{tpu_custom_call.1} parent=1 // pred_fallthru
      _
    // Predicated region
    $region66: #{tpu_custom_call.1} parent=1 // pred_check
      _
    $region67: #{tpu_custom_call.1} parent=1 // pred_check_branch
      %106 = sbr.rel (0) target = $region69
    $region68: #{tpu_custom_call.1} parent=1 // pred_region
      %107 = dma.done [#allocation6], 128
    $region69: #{tpu_custom_call.1} parent=1 // pred_fallthru
      _
    // Predicated region
    $region70: #{tpu_custom_call.1} parent=1 // pred_check
      _
    $region71: #{tpu_custom_call.1} parent=1 // pred_check_branch
      %109 = sbr.rel (0) target = $region73
    $region72: #{tpu_custom_call.1} parent=1 // pred_region
      %110 = dma.done [#allocation6], 1024
    $region73: #{tpu_custom_call.1} parent=1 // pred_fallthru
      _
    // Predicated region
    $region74: #{tpu_custom_call.1} parent=1 // pred_check
      _
    $region75: #{tpu_custom_call.1} parent=1 // pred_check_branch
      %112 = sbr.rel (0) target = $region77
    $region76: #{tpu_custom_call.1} parent=1 // pred_region
      %113 = dma.done [#allocation9], 1024
    $region77: #{tpu_custom_call.1} parent=1 // pred_fallthru
      _
    // Predicated region
    $region78: #{tpu_custom_call.1} parent=1 // pred_check
      _
    $region79: #{tpu_custom_call.1} parent=1 // pred_check_branch
      %115 = sbr.rel (0) target = $region81
    $region80: #{tpu_custom_call.1} parent=1 // pred_region
      %116 = dma.done [#allocation9], 1024
    $region81: #{tpu_custom_call.1} parent=1 // pred_fallthru
      _
    %v118 = vlaneseq
    %v119 = vand.u32 %v118, 127
    %vm120 = vcmp.lt.s32.totalorder %v119, 8
    %v121 = vsel %vm120, 1, 0
    %v122 = vcvt.s32.f32 %v121
    %v123 = vld [vmem:[#allocation2] sm:$0xf]
    %v124 = vld [vmem:[#allocation5] sm:$0xf]
    %v125 = vld [vmem:[#allocation5 + $0x4] sm:$0xf]
    %v128 = vunpack.c.l.b16 %v124
    %v129 = vunpack.c.l.b16 %v125
    %v130 = vpack.c.b16 %v129, %v128
    %vm132 = vcmask 130048
    %v134 = vsel %vm132, %v123, 0
    %136 = vmatprep.subr.bf16.mxu0 0
    %137 = vmatpush1.bf16.msra.mxu0 %v130
    %138 = vmatprep.subr.bf16.mxu0 0
    %139 = vmatpush1.bf16.msra.mxu0 0
    %140 = vmatprep.subr.bf16.mxu0 0
    %141 = vmatpush1.bf16.msra.mxu0 0
    %142 = vmatprep.subr.bf16.mxu0 0
    %143 = vmatpush1.bf16.msra.mxu0 0
    %144 = vmatprep.subr.bf16.mxu0 0
    %145 = vmatpush1.bf16.msra.mxu0 0
    %146 = vmatprep.subr.bf16.mxu0 0
    %147 = vmatpush1.bf16.msra.mxu0 0
    %148 = vmatprep.subr.bf16.mxu0 0
    %149 = vmatpush1.bf16.msra.mxu0 0
    %150 = vmatprep.subr.bf16.mxu0 0
    %151 = vmatpush1.bf16.msra.mxu0 0
    %152 = vmatprep.subr.bf16.mxu0 0
    %153 = vmatpush1.bf16.msra.mxu0 0
    %154 = vmatprep.subr.bf16.mxu0 0
    %155 = vmatpush1.bf16.msra.mxu0 0
    %156 = vmatprep.subr.bf16.mxu0 0
    %157 = vmatpush1.bf16.msra.mxu0 0
    %158 = vmatprep.subr.bf16.mxu0 0
    %159 = vmatpush1.bf16.msra.mxu0 0
    %160 = vmatprep.subr.bf16.mxu0 0
    %161 = vmatpush1.bf16.msra.mxu0 0
    %162 = vmatprep.subr.bf16.mxu0 0
    %163 = vmatpush1.bf16.msra.mxu0 0
    %164 = vmatprep.subr.bf16.mxu0 0
    %165 = vmatpush1.bf16.msra.mxu0 0
    %166 = vmatprep.subr.bf16.mxu0 0
    %167 = vmatpush1.bf16.msra.mxu0 0
    %168 = vmatprep.mubr.bf16.mxu0 0
    %169 = vmatmul.mubr.bf16.gmra.mrb[0].mxu0 %v134
    %v170 = vpop.f32.mrb[0].mxu0
    %v171 = vadd.f32 0.0, %v170
    %v172 = vpop.f32.mrb[0].mxu0
    %v173 = vpop.f32.mrb[0].mxu0
    %v174 = vpop.f32.mrb[0].mxu0
    %175 = vdwg.mxu0
    %vm176 = vcmask 64512
    %v178 = vsel %vm176, %v122, 0
    %180 = vmatprep.subr.mxu0 0.0
    %181 = vmatpush1.msra.mxu0 %v171
    %182 = vmatprep.subr.mxu0 0.0
    %183 = vmatpush1.msra.mxu0 0.0
    %184 = vmatprep.subr.mxu0 0.0
    %185 = vmatpush1.msra.mxu0 0.0
    %186 = vmatprep.subr.mxu0 0.0
    %187 = vmatpush1.msra.mxu0 0.0
    %188 = vmatprep.subr.mxu0 0.0
    %189 = vmatpush1.msra.mxu0 0.0
    %190 = vmatprep.subr.mxu0 0.0
    %191 = vmatpush1.msra.mxu0 0.0
    %192 = vmatprep.subr.mxu0 0.0
    %193 = vmatpush1.msra.mxu0 0.0
    %194 = vmatprep.subr.mxu0 0.0
    %195 = vmatpush1.msra.mxu0 0.0
    %196 = vmatprep.subr.mxu0 0.0
    %197 = vmatpush1.msra.mxu0 0.0
    %198 = vmatprep.subr.mxu0 0.0
    %199 = vmatpush1.msra.mxu0 0.0
    %200 = vmatprep.subr.mxu0 0.0
    %201 = vmatpush1.msra.mxu0 0.0
    %202 = vmatprep.subr.mxu0 0.0
    %203 = vmatpush1.msra.mxu0 0.0
    %204 = vmatprep.subr.mxu0 0.0
    %205 = vmatpush1.msra.mxu0 0.0
    %206 = vmatprep.subr.mxu0 0.0
    %207 = vmatpush1.msra.mxu0 0.0
    %208 = vmatprep.subr.mxu0 0.0
    %209 = vmatpush1.msra.mxu0 0.0
    %210 = vmatprep.subr.mxu0 0.0
    %211 = vmatpush1.msra.mxu0 0.0
    %212 = vmatprep.subr.mxu0 0.0
    %213 = vmatpush1.msra.mxu0 0.0
    %214 = vmatprep.subr.mxu0 0.0
    %215 = vmatpush1.msra.mxu0 0.0
    %216 = vmatprep.subr.mxu0 0.0
    %217 = vmatpush1.msra.mxu0 0.0
    %218 = vmatprep.subr.mxu0 0.0
    %219 = vmatpush1.msra.mxu0 0.0
    %220 = vmatprep.subr.mxu0 0.0
    %221 = vmatpush1.msra.mxu0 0.0
    %222 = vmatprep.subr.mxu0 0.0
    %223 = vmatpush1.msra.mxu0 0.0
    %224 = vmatprep.subr.mxu0 0.0
    %225 = vmatpush1.msra.mxu0 0.0
    %226 = vmatprep.subr.mxu0 0.0
    %227 = vmatpush1.msra.mxu0 0.0
    %228 = vmatprep.subr.mxu0 0.0
    %229 = vmatpush1.msra.mxu0 0.0
    %230 = vmatprep.subr.mxu0 0.0
    %231 = vmatpush1.msra.mxu0 0.0
    %232 = vmatprep.subr.mxu0 0.0
    %233 = vmatpush1.msra.mxu0 0.0
    %234 = vmatprep.subr.mxu0 0.0
    %235 = vmatpush1.msra.mxu0 0.0
    %236 = vmatprep.subr.mxu0 0.0
    %237 = vmatpush1.msra.mxu0 0.0
    %238 = vmatprep.subr.mxu0 0.0
    %239 = vmatpush1.msra.mxu0 0.0
    %240 = vmatprep.subr.mxu0 0.0
    %241 = vmatpush1.msra.mxu0 0.0
    %242 = vmatprep.subr.mxu0 0.0
    %243 = vmatpush1.msra.mxu0 0.0
    %244 = vmatprep.mubr.f32.mxu0 0.0
    %245 = vmatmul.mubr.f32.gmra.mrb[0].mxu0 %v178
    %v246 = vpop.f32.mrb[0].mxu0
    %v247 = vadd.f32 0.0, %v246
    %v248 = vpop.f32.mrb[0].mxu0
    %249 = vdwg.mxu0
    %v250 = vmul.f32 %v171, %v171
    %251 = vmatprep.subr.mxu0 0.0
    %252 = vmatpush1.msra.mxu0 %v250
    %253 = vmatprep.subr.mxu0 0.0
    %254 = vmatpush1.msra.mxu0 0.0
    %255 = vmatprep.subr.mxu0 0.0
    %256 = vmatpush1.msra.mxu0 0.0
    %257 = vmatprep.subr.mxu0 0.0
    %258 = vmatpush1.msra.mxu0 0.0
    %259 = vmatprep.subr.mxu0 0.0
    %260 = vmatpush1.msra.mxu0 0.0
    %261 = vmatprep.subr.mxu0 0.0
    %262 = vmatpush1.msra.mxu0 0.0
    %263 = vmatprep.subr.mxu0 0.0
    %264 = vmatpush1.msra.mxu0 0.0
    %265 = vmatprep.subr.mxu0 0.0
    %266 = vmatpush1.msra.mxu0 0.0
    %267 = vmatprep.subr.mxu0 0.0
    %268 = vmatpush1.msra.mxu0 0.0
    %269 = vmatprep.subr.mxu0 0.0
    %270 = vmatpush1.msra.mxu0 0.0
    %271 = vmatprep.subr.mxu0 0.0
    %272 = vmatpush1.msra.mxu0 0.0
    %273 = vmatprep.subr.mxu0 0.0
    %274 = vmatpush1.msra.mxu0 0.0
    %275 = vmatprep.subr.mxu0 0.0
    %276 = vmatpush1.msra.mxu0 0.0
    %277 = vmatprep.subr.mxu0 0.0
    %278 = vmatpush1.msra.mxu0 0.0
    %279 = vmatprep.subr.mxu0 0.0
    %280 = vmatpush1.msra.mxu0 0.0
    %281 = vmatprep.subr.mxu0 0.0
    %282 = vmatpush1.msra.mxu0 0.0
    %283 = vmatprep.subr.mxu0 0.0
    %284 = vmatpush1.msra.mxu0 0.0
    %285 = vmatprep.subr.mxu0 0.0
    %286 = vmatpush1.msra.mxu0 0.0
    %287 = vmatprep.subr.mxu0 0.0
    %288 = vmatpush1.msra.mxu0 0.0
    %289 = vmatprep.subr.mxu0 0.0
    %290 = vmatpush1.msra.mxu0 0.0
    %291 = vmatprep.subr.mxu0 0.0
    %292 = vmatpush1.msra.mxu0 0.0
    %293 = vmatprep.subr.mxu0 0.0
    %294 = vmatpush1.msra.mxu0 0.0
    %295 = vmatprep.subr.mxu0 0.0
    %296 = vmatpush1.msra.mxu0 0.0
    %297 = vmatprep.subr.mxu0 0.0
    %298 = vmatpush1.msra.mxu0 0.0
    %299 = vmatprep.subr.mxu0 0.0
    %300 = vmatpush1.msra.mxu0 0.0
    %301 = vmatprep.subr.mxu0 0.0
    %302 = vmatpush1.msra.mxu0 0.0
    %303 = vmatprep.subr.mxu0 0.0
    %304 = vmatpush1.msra.mxu0 0.0
    %305 = vmatprep.subr.mxu0 0.0
    %306 = vmatpush1.msra.mxu0 0.0
    %307 = vmatprep.subr.mxu0 0.0
    %308 = vmatpush1.msra.mxu0 0.0
    %309 = vmatprep.subr.mxu0 0.0
    %310 = vmatpush1.msra.mxu0 0.0
    %311 = vmatprep.subr.mxu0 0.0
    %312 = vmatpush1.msra.mxu0 0.0
    %313 = vmatprep.subr.mxu0 0.0
    %314 = vmatpush1.msra.mxu0 0.0
    %315 = vmatprep.mubr.f32.mxu0 0.0
    %316 = vmatmul.mubr.f32.gmra.mrb[0].mxu0 %v178
    %v317 = vpop.f32.mrb[0].mxu0
    %v318 = vadd.f32 0.0, %v317
    %v319 = vpop.f32.mrb[0].mxu0
    %320 = vdwg.mxu0
    %v321 = vmul.f32 %v247, 0.125
    %v322 = vmul.f32 %v318, 0.125
    %v323 = vmul.f32 %v321, %v321
    %v324 = vsub.f32 %v322, %v323
    %v325 = vmax.f32 %v324, 0.0
    %v326 = vld [vmem:[%s3] sm:$0x1]
    %v327 = vadd.f32 %v325, 1e-05
    %v328 = vrsqrt.pop %v327
    %v329 = vmul.f32 %v326, %v328
    %v330 = vld [vmem:[%s4] sm:$0x1]
    %v331 = vmul.f32 %v321, %v329
    %v332 = vsub.f32 %v330, %v331
    %v334 = vlaneseq
    %v335 = vshrl.u32 %v334, 7
    %v336 = vsub.s32 0, %v335
    %v337 = vrot.slane %v329, %v336
    %v339 = vmul.f32 %v171, %v337
    %v341 = vlaneseq
    %v342 = vshrl.u32 %v341, 7
    %v343 = vsub.s32 0, %v342
    %v344 = vrot.slane %v332, %v343
    %v346 = vadd.f32 %v339, %v344
    %v347 = vmul.f32 %v346, 0.5
    %v348 = vtanh.pop %v347
    %v349 = vadd.f32 %v348, 1.0
    %v350 = vmul.f32 %v349, 0.5
    %v351 = vpack.c.bf16 %v350, %v350
    %v352 = vld [vmem:[#allocation7] sm:$0xf]
    %v353 = vld [vmem:[#allocation7 + $0x4] sm:$0xf]
    %v354 = vld [vmem:[#allocation7 + $0x8] sm:$0xf]
    %v355 = vld [vmem:[#allocation7 + $0xc] sm:$0xf]
    %v356 = vld [vmem:[#allocation7 + $0x10] sm:$0xf]
    %v357 = vld [vmem:[#allocation7 + $0x14] sm:$0xf]
    %v358 = vld [vmem:[#allocation7 + $0x18] sm:$0xf]
    %v359 = vld [vmem:[#allocation7 + $0x1c] sm:$0xf]
    %v360 = vld [vmem:[#allocation7 + $0x20] sm:$0xf]
    %v361 = vld [vmem:[#allocation7 + $0x24] sm:$0xf]
    %v362 = vld [vmem:[#allocation7 + $0x28] sm:$0xf]
    %v363 = vld [vmem:[#allocation7 + $0x2c] sm:$0xf]
    %v364 = vld [vmem:[#allocation7 + $0x30] sm:$0xf]
    %v365 = vld [vmem:[#allocation7 + $0x34] sm:$0xf]
    %v366 = vld [vmem:[#allocation7 + $0x38] sm:$0xf]
    %v367 = vld [vmem:[#allocation7 + $0x3c] sm:$0xf]
    %v384 = vunpack.c.l.b16 %v352
    %v385 = vunpack.c.l.b16 %v353
    %v386 = vunpack.c.l.b16 %v354
    %v387 = vunpack.c.l.b16 %v355
    %v388 = vunpack.c.l.b16 %v356
    %v389 = vunpack.c.l.b16 %v357
    %v390 = vunpack.c.l.b16 %v358
    %v391 = vunpack.c.l.b16 %v359
    %v392 = vunpack.c.l.b16 %v360
    %v393 = vunpack.c.l.b16 %v361
    %v394 = vunpack.c.l.b16 %v362
    %v395 = vunpack.c.l.b16 %v363
    %v396 = vunpack.c.l.b16 %v364
    %v397 = vunpack.c.l.b16 %v365
    %v398 = vunpack.c.l.b16 %v366
    %v399 = vunpack.c.l.b16 %v367
    %v400 = vpack.c.b16 %v385, %v384
    %v401 = vpack.c.b16 %v387, %v386
    %v402 = vpack.c.b16 %v389, %v388
    %v403 = vpack.c.b16 %v391, %v390
    %v404 = vpack.c.b16 %v393, %v392
    %v405 = vpack.c.b16 %v395, %v394
    %v406 = vpack.c.b16 %v397, %v396
    %v407 = vpack.c.b16 %v399, %v398
    %416 = vmatprep.subr.bf16.mxu0 0
    %417 = vmatpush1.bf16.msra.mxu0 %v400
    %418 = vmatprep.subr.bf16.mxu0 0
    %419 = vmatpush1.bf16.msra.mxu0 %v401
    %420 = vmatprep.subr.bf16.mxu0 0
    %421 = vmatpush1.bf16.msra.mxu0 %v402
    %422 = vmatprep.subr.bf16.mxu0 0
    %423 = vmatpush1.bf16.msra.mxu0 %v403
    %424 = vmatprep.subr.bf16.mxu0 0
    %425 = vmatpush1.bf16.msra.mxu0 %v404
    %426 = vmatprep.subr.bf16.mxu0 0
    %427 = vmatpush1.bf16.msra.mxu0 %v405
    %428 = vmatprep.subr.bf16.mxu0 0
    %429 = vmatpush1.bf16.msra.mxu0 %v406
    %430 = vmatprep.subr.bf16.mxu0 0
    %431 = vmatpush1.bf16.msra.mxu0 %v407
    %432 = vmatprep.subr.bf16.mxu0 0
    %433 = vmatpush1.bf16.msra.mxu0 0
    %434 = vmatprep.subr.bf16.mxu0 0
    %435 = vmatpush1.bf16.msra.mxu0 0
    %436 = vmatprep.subr.bf16.mxu0 0
    %437 = vmatpush1.bf16.msra.mxu0 0
    %438 = vmatprep.subr.bf16.mxu0 0
    %439 = vmatpush1.bf16.msra.mxu0 0
    %440 = vmatprep.subr.bf16.mxu0 0
    %441 = vmatpush1.bf16.msra.mxu0 0
    %442 = vmatprep.subr.bf16.mxu0 0
    %443 = vmatpush1.bf16.msra.mxu0 0
    %444 = vmatprep.subr.bf16.mxu0 0
    %445 = vmatpush1.bf16.msra.mxu0 0
    %446 = vmatprep.subr.bf16.mxu0 0
    %447 = vmatpush1.bf16.msra.mxu0 0
    %448 = vmatprep.mubr.bf16.mxu0 0
    %449 = vmatmul.mubr.bf16.gmra.mrb[0].mxu0 %v351
    %v450 = vpop.f32.mrb[0].mxu0
    %v451 = vadd.f32 0.0, %v450
    %v452 = vpop.f32.mrb[0].mxu0
    %v453 = vpop.f32.mrb[0].mxu0
    %v454 = vpop.f32.mrb[0].mxu0
    %455 = vdwg.mxu0
    %456 = vmatprep.subr.mxu0 0.0
    %457 = vmatpush1.msra.mxu0 %v451
    %458 = vmatprep.subr.mxu0 0.0
    %459 = vmatpush1.msra.mxu0 0.0
    %460 = vmatprep.subr.mxu0 0.0
    %461 = vmatpush1.msra.mxu0 0.0
    %462 = vmatprep.subr.mxu0 0.0
    %463 = vmatpush1.msra.mxu0 0.0
    %464 = vmatprep.subr.mxu0 0.0
    %465 = vmatpush1.msra.mxu0 0.0
    %466 = vmatprep.subr.mxu0 0.0
    %467 = vmatpush1.msra.mxu0 0.0
    %468 = vmatprep.subr.mxu0 0.0
    %469 = vmatpush1.msra.mxu0 0.0
    %470 = vmatprep.subr.mxu0 0.0
    %471 = vmatpush1.msra.mxu0 0.0
    %472 = vmatprep.subr.mxu0 0.0
    %473 = vmatpush1.msra.mxu0 0.0
    %474 = vmatprep.subr.mxu0 0.0
    %475 = vmatpush1.msra.mxu0 0.0
    %476 = vmatprep.subr.mxu0 0.0
    %477 = vmatpush1.msra.mxu0 0.0
    %478 = vmatprep.subr.mxu0 0.0
    %479 = vmatpush1.msra.mxu0 0.0
    %480 = vmatprep.subr.mxu0 0.0
    %481 = vmatpush1.msra.mxu0 0.0
    %482 = vmatprep.subr.mxu0 0.0
    %483 = vmatpush1.msra.mxu0 0.0
    %484 = vmatprep.subr.mxu0 0.0
    %485 = vmatpush1.msra.mxu0 0.0
    %486 = vmatprep.subr.mxu0 0.0
    %487 = vmatpush1.msra.mxu0 0.0
    %488 = vmatprep.subr.mxu0 0.0
    %489 = vmatpush1.msra.mxu0 0.0
    %490 = vmatprep.subr.mxu0 0.0
    %491 = vmatpush1.msra.mxu0 0.0
    %492 = vmatprep.subr.mxu0 0.0
    %493 = vmatpush1.msra.mxu0 0.0
    %494 = vmatprep.subr.mxu0 0.0
    %495 = vmatpush1.msra.mxu0 0.0
    %496 = vmatprep.subr.mxu0 0.0
    %497 = vmatpush1.msra.mxu0 0.0
    %498 = vmatprep.subr.mxu0 0.0
    %499 = vmatpush1.msra.mxu0 0.0
    %500 = vmatprep.subr.mxu0 0.0
    %501 = vmatpush1.msra.mxu0 0.0
    %502 = vmatprep.subr.mxu0 0.0
    %503 = vmatpush1.msra.mxu0 0.0
    %504 = vmatprep.subr.mxu0 0.0
    %505 = vmatpush1.msra.mxu0 0.0
    %506 = vmatprep.subr.mxu0 0.0
    %507 = vmatpush1.msra.mxu0 0.0
    %508 = vmatprep.subr.mxu0 0.0
    %509 = vmatpush1.msra.mxu0 0.0
    %510 = vmatprep.subr.mxu0 0.0
    %511 = vmatpush1.msra.mxu0 0.0
    %512 = vmatprep.subr.mxu0 0.0
    %513 = vmatpush1.msra.mxu0 0.0
    %514 = vmatprep.subr.mxu0 0.0
    %515 = vmatpush1.msra.mxu0 0.0
    %516 = vmatprep.subr.mxu0 0.0
    %517 = vmatpush1.msra.mxu0 0.0
    %518 = vmatprep.subr.mxu0 0.0
    %519 = vmatpush1.msra.mxu0 0.0
    %520 = vmatprep.mubr.f32.mxu0 0.0
    %521 = vmatmul.mubr.f32.gmra.mrb[0].mxu0 %v178
    %v522 = vpop.f32.mrb[0].mxu0
    %v523 = vadd.f32 0.0, %v522
    %v524 = vpop.f32.mrb[0].mxu0
    %525 = vdwg.mxu0
    %v526 = vmul.f32 %v451, %v451
    %527 = vmatprep.subr.mxu0 0.0
    %528 = vmatpush1.msra.mxu0 %v526
    %529 = vmatprep.subr.mxu0 0.0
    %530 = vmatpush1.msra.mxu0 0.0
    %531 = vmatprep.subr.mxu0 0.0
    %532 = vmatpush1.msra.mxu0 0.0
    %533 = vmatprep.subr.mxu0 0.0
    %534 = vmatpush1.msra.mxu0 0.0
    %535 = vmatprep.subr.mxu0 0.0
    %536 = vmatpush1.msra.mxu0 0.0
    %537 = vmatprep.subr.mxu0 0.0
    %538 = vmatpush1.msra.mxu0 0.0
    %539 = vmatprep.subr.mxu0 0.0
    %540 = vmatpush1.msra.mxu0 0.0
    %541 = vmatprep.subr.mxu0 0.0
    %542 = vmatpush1.msra.mxu0 0.0
    %543 = vmatprep.subr.mxu0 0.0
    %544 = vmatpush1.msra.mxu0 0.0
    %545 = vmatprep.subr.mxu0 0.0
    %546 = vmatpush1.msra.mxu0 0.0
    %547 = vmatprep.subr.mxu0 0.0
    %548 = vmatpush1.msra.mxu0 0.0
    %549 = vmatprep.subr.mxu0 0.0
    %550 = vmatpush1.msra.mxu0 0.0
    %551 = vmatprep.subr.mxu0 0.0
    %552 = vmatpush1.msra.mxu0 0.0
    %553 = vmatprep.subr.mxu0 0.0
    %554 = vmatpush1.msra.mxu0 0.0
    %555 = vmatprep.subr.mxu0 0.0
    %556 = vmatpush1.msra.mxu0 0.0
    %557 = vmatprep.subr.mxu0 0.0
    %558 = vmatpush1.msra.mxu0 0.0
    %559 = vmatprep.subr.mxu0 0.0
    %560 = vmatpush1.msra.mxu0 0.0
    %561 = vmatprep.subr.mxu0 0.0
    %562 = vmatpush1.msra.mxu0 0.0
    %563 = vmatprep.subr.mxu0 0.0
    %564 = vmatpush1.msra.mxu0 0.0
    %565 = vmatprep.subr.mxu0 0.0
    %566 = vmatpush1.msra.mxu0 0.0
    %567 = vmatprep.subr.mxu0 0.0
    %568 = vmatpush1.msra.mxu0 0.0
    %569 = vmatprep.subr.mxu0 0.0
    %570 = vmatpush1.msra.mxu0 0.0
    %571 = vmatprep.subr.mxu0 0.0
    %572 = vmatpush1.msra.mxu0 0.0
    %573 = vmatprep.subr.mxu0 0.0
    %574 = vmatpush1.msra.mxu0 0.0
    %575 = vmatprep.subr.mxu0 0.0
    %576 = vmatpush1.msra.mxu0 0.0
    %577 = vmatprep.subr.mxu0 0.0
    %578 = vmatpush1.msra.mxu0 0.0
    %579 = vmatprep.subr.mxu0 0.0
    %580 = vmatpush1.msra.mxu0 0.0
    %581 = vmatprep.subr.mxu0 0.0
    %582 = vmatpush1.msra.mxu0 0.0
    %583 = vmatprep.subr.mxu0 0.0
    %584 = vmatpush1.msra.mxu0 0.0
    %585 = vmatprep.subr.mxu0 0.0
    %586 = vmatpush1.msra.mxu0 0.0
    %587 = vmatprep.subr.mxu0 0.0
    %588 = vmatpush1.msra.mxu0 0.0
    %589 = vmatprep.subr.mxu0 0.0
    %590 = vmatpush1.msra.mxu0 0.0
    %591 = vmatprep.mubr.f32.mxu0 0.0
    %592 = vmatmul.mubr.f32.gmra.mrb[0].mxu0 %v178
    %v593 = vpop.f32.mrb[0].mxu0
    %v594 = vadd.f32 0.0, %v593
    %v595 = vpop.f32.mrb[0].mxu0
    %596 = vdwg.mxu0
    %v597 = vmul.f32 %v523, 0.125
    %v598 = vmul.f32 %v594, 0.125
    %v599 = vmul.f32 %v597, %v597
    %v600 = vsub.f32 %v598, %v599
    %v601 = vmax.f32 %v600, 0.0
    %v602 = vld [vmem:[%s7] sm:$0x1]
    %v603 = vadd.f32 %v601, 1e-05
    %v604 = vrsqrt.pop %v603
    %v605 = vmul.f32 %v602, %v604
    %v606 = vld [vmem:[%s8] sm:$0x1]
    %v607 = vmul.f32 %v597, %v605
    %v608 = vsub.f32 %v606, %v607
    %v610 = vlaneseq
    %v611 = vshrl.u32 %v610, 7
    %v612 = vsub.s32 0, %v611
    %v613 = vrot.slane %v605, %v612
    %v615 = vmul.f32 %v451, %v613
    %v617 = vlaneseq
    %v618 = vshrl.u32 %v617, 7
    %v619 = vsub.s32 0, %v618
    %v620 = vrot.slane %v608, %v619
    %v622 = vadd.f32 %v615, %v620
    %v623 = vmul.f32 %v622, 0.5
    %v624 = vtanh.pop %v623
    %v625 = vadd.f32 %v624, 1.0
    %v626 = vmul.f32 %v625, 0.5
    %v627 = vpack.c.bf16 %v626, %v626
    %v628 = vld [vmem:[#allocation8] sm:$0xf]
    %v629 = vld [vmem:[#allocation8 + $0x4] sm:$0xf]
    %v630 = vld [vmem:[#allocation8 + $0x8] sm:$0xf]
    %v631 = vld [vmem:[#allocation8 + $0xc] sm:$0xf]
    %v632 = vld [vmem:[#allocation8 + $0x10] sm:$0xf]
    %v633 = vld [vmem:[#allocation8 + $0x14] sm:$0xf]
    %v634 = vld [vmem:[#allocation8 + $0x18] sm:$0xf]
    %v635 = vld [vmem:[#allocation8 + $0x1c] sm:$0xf]
    %v636 = vld [vmem:[#allocation8 + $0x20] sm:$0xf]
    %v637 = vld [vmem:[#allocation8 + $0x24] sm:$0xf]
    %v638 = vld [vmem:[#allocation8 + $0x28] sm:$0xf]
    %v639 = vld [vmem:[#allocation8 + $0x2c] sm:$0xf]
    %v640 = vld [vmem:[#allocation8 + $0x30] sm:$0xf]
    %v641 = vld [vmem:[#allocation8 + $0x34] sm:$0xf]
    %v642 = vld [vmem:[#allocation8 + $0x38] sm:$0xf]
    %v643 = vld [vmem:[#allocation8 + $0x3c] sm:$0xf]
    %v660 = vunpack.c.l.b16 %v628
    %v661 = vunpack.c.l.b16 %v629
    %v662 = vunpack.c.l.b16 %v630
    %v663 = vunpack.c.l.b16 %v631
    %v664 = vunpack.c.l.b16 %v632
    %v665 = vunpack.c.l.b16 %v633
    %v666 = vunpack.c.l.b16 %v634
    %v667 = vunpack.c.l.b16 %v635
    %v668 = vunpack.c.l.b16 %v636
    %v669 = vunpack.c.l.b16 %v637
    %v670 = vunpack.c.l.b16 %v638
    %v671 = vunpack.c.l.b16 %v639
    %v672 = vunpack.c.l.b16 %v640
    %v673 = vunpack.c.l.b16 %v641
    %v674 = vunpack.c.l.b16 %v642
    %v675 = vunpack.c.l.b16 %v643
    %v676 = vpack.c.b16 %v661, %v660
    %v677 = vpack.c.b16 %v663, %v662
    %v678 = vpack.c.b16 %v665, %v664
    %v679 = vpack.c.b16 %v667, %v666
    %v680 = vpack.c.b16 %v669, %v668
    %v681 = vpack.c.b16 %v671, %v670
    %v682 = vpack.c.b16 %v673, %v672
    %v683 = vpack.c.b16 %v675, %v674
    %692 = vmatprep.subr.bf16.mxu0 0
    %693 = vmatpush1.bf16.msra.mxu0 %v676
    %694 = vmatprep.subr.bf16.mxu0 0
    %695 = vmatpush1.bf16.msra.mxu0 %v677
    %696 = vmatprep.subr.bf16.mxu0 0
    %697 = vmatpush1.bf16.msra.mxu0 %v678
    %698 = vmatprep.subr.bf16.mxu0 0
    %699 = vmatpush1.bf16.msra.mxu0 %v679
    %700 = vmatprep.subr.bf16.mxu0 0
    %701 = vmatpush1.bf16.msra.mxu0 %v680
    %702 = vmatprep.subr.bf16.mxu0 0
    %703 = vmatpush1.bf16.msra.mxu0 %v681
    %704 = vmatprep.subr.bf16.mxu0 0
    %705 = vmatpush1.bf16.msra.mxu0 %v682
    %706 = vmatprep.subr.bf16.mxu0 0
    %707 = vmatpush1.bf16.msra.mxu0 %v683
    %708 = vmatprep.subr.bf16.mxu0 0
    %709 = vmatpush1.bf16.msra.mxu0 0
    %710 = vmatprep.subr.bf16.mxu0 0
    %711 = vmatpush1.bf16.msra.mxu0 0
    %712 = vmatprep.subr.bf16.mxu0 0
    %713 = vmatpush1.bf16.msra.mxu0 0
    %714 = vmatprep.subr.bf16.mxu0 0
    %715 = vmatpush1.bf16.msra.mxu0 0
    %716 = vmatprep.subr.bf16.mxu0 0
    %717 = vmatpush1.bf16.msra.mxu0 0
    %718 = vmatprep.subr.bf16.mxu0 0
    %719 = vmatpush1.bf16.msra.mxu0 0
    %720 = vmatprep.subr.bf16.mxu0 0
    %721 = vmatpush1.bf16.msra.mxu0 0
    %722 = vmatprep.subr.bf16.mxu0 0
    %723 = vmatpush1.bf16.msra.mxu0 0
    %724 = vmatprep.mubr.bf16.mxu0 0
    %725 = vmatmul.mubr.bf16.gmra.mrb[0].mxu0 %v627
    %v726 = vpop.f32.mrb[0].mxu0
    %v727 = vadd.f32 0.0, %v726
    %v728 = vpop.f32.mrb[0].mxu0
    %v729 = vpop.f32.mrb[0].mxu0
    %v730 = vpop.f32.mrb[0].mxu0
    %731 = vdwg.mxu0
    %732 = vmatprep.subr.mxu0 0.0
    %733 = vmatpush1.msra.mxu0 %v727
    %734 = vmatprep.subr.mxu0 0.0
    %735 = vmatpush1.msra.mxu0 0.0
    %736 = vmatprep.subr.mxu0 0.0
    %737 = vmatpush1.msra.mxu0 0.0
    %738 = vmatprep.subr.mxu0 0.0
    %739 = vmatpush1.msra.mxu0 0.0
    %740 = vmatprep.subr.mxu0 0.0
    %741 = vmatpush1.msra.mxu0 0.0
    %742 = vmatprep.subr.mxu0 0.0
    %743 = vmatpush1.msra.mxu0 0.0
    %744 = vmatprep.subr.mxu0 0.0
    %745 = vmatpush1.msra.mxu0 0.0
    %746 = vmatprep.subr.mxu0 0.0
    %747 = vmatpush1.msra.mxu0 0.0
    %748 = vmatprep.subr.mxu0 0.0
    %749 = vmatpush1.msra.mxu0 0.0
    %750 = vmatprep.subr.mxu0 0.0
    %751 = vmatpush1.msra.mxu0 0.0
    %752 = vmatprep.subr.mxu0 0.0
    %753 = vmatpush1.msra.mxu0 0.0
    %754 = vmatprep.subr.mxu0 0.0
    %755 = vmatpush1.msra.mxu0 0.0
    %756 = vmatprep.subr.mxu0 0.0
    %757 = vmatpush1.msra.mxu0 0.0
    %758 = vmatprep.subr.mxu0 0.0
    %759 = vmatpush1.msra.mxu0 0.0
    %760 = vmatprep.subr.mxu0 0.0
    %761 = vmatpush1.msra.mxu0 0.0
    %762 = vmatprep.subr.mxu0 0.0
    %763 = vmatpush1.msra.mxu0 0.0
    %764 = vmatprep.subr.mxu0 0.0
    %765 = vmatpush1.msra.mxu0 0.0
    %766 = vmatprep.subr.mxu0 0.0
    %767 = vmatpush1.msra.mxu0 0.0
    %768 = vmatprep.subr.mxu0 0.0
    %769 = vmatpush1.msra.mxu0 0.0
    %770 = vmatprep.subr.mxu0 0.0
    %771 = vmatpush1.msra.mxu0 0.0
    %772 = vmatprep.subr.mxu0 0.0
    %773 = vmatpush1.msra.mxu0 0.0
    %774 = vmatprep.subr.mxu0 0.0
    %775 = vmatpush1.msra.mxu0 0.0
    %776 = vmatprep.subr.mxu0 0.0
    %777 = vmatpush1.msra.mxu0 0.0
    %778 = vmatprep.subr.mxu0 0.0
    %779 = vmatpush1.msra.mxu0 0.0
    %780 = vmatprep.subr.mxu0 0.0
    %781 = vmatpush1.msra.mxu0 0.0
    %782 = vmatprep.subr.mxu0 0.0
    %783 = vmatpush1.msra.mxu0 0.0
    %784 = vmatprep.subr.mxu0 0.0
    %785 = vmatpush1.msra.mxu0 0.0
    %786 = vmatprep.subr.mxu0 0.0
    %787 = vmatpush1.msra.mxu0 0.0
    %788 = vmatprep.subr.mxu0 0.0
    %789 = vmatpush1.msra.mxu0 0.0
    %790 = vmatprep.subr.mxu0 0.0
    %791 = vmatpush1.msra.mxu0 0.0
    %792 = vmatprep.subr.mxu0 0.0
    %793 = vmatpush1.msra.mxu0 0.0
    %794 = vmatprep.subr.mxu0 0.0
    %795 = vmatpush1.msra.mxu0 0.0
    %796 = vmatprep.mubr.f32.mxu0 0.0
    %797 = vmatmul.mubr.f32.gmra.mrb[0].mxu0 %v178
    %v798 = vpop.f32.mrb[0].mxu0
    %v799 = vadd.f32 0.0, %v798
    %v800 = vpop.f32.mrb[0].mxu0
    %801 = vdwg.mxu0
    %v802 = vmul.f32 %v727, %v727
    %803 = vmatprep.subr.mxu0 0.0
    %804 = vmatpush1.msra.mxu0 %v802
    %805 = vmatprep.subr.mxu0 0.0
    %806 = vmatpush1.msra.mxu0 0.0
    %807 = vmatprep.subr.mxu0 0.0
    %808 = vmatpush1.msra.mxu0 0.0
    %809 = vmatprep.subr.mxu0 0.0
    %810 = vmatpush1.msra.mxu0 0.0
    %811 = vmatprep.subr.mxu0 0.0
    %812 = vmatpush1.msra.mxu0 0.0
    %813 = vmatprep.subr.mxu0 0.0
    %814 = vmatpush1.msra.mxu0 0.0
    %815 = vmatprep.subr.mxu0 0.0
    %816 = vmatpush1.msra.mxu0 0.0
    %817 = vmatprep.subr.mxu0 0.0
    %818 = vmatpush1.msra.mxu0 0.0
    %819 = vmatprep.subr.mxu0 0.0
    %820 = vmatpush1.msra.mxu0 0.0
    %821 = vmatprep.subr.mxu0 0.0
    %822 = vmatpush1.msra.mxu0 0.0
    %823 = vmatprep.subr.mxu0 0.0
    %824 = vmatpush1.msra.mxu0 0.0
    %825 = vmatprep.subr.mxu0 0.0
    %826 = vmatpush1.msra.mxu0 0.0
    %827 = vmatprep.subr.mxu0 0.0
    %828 = vmatpush1.msra.mxu0 0.0
    %829 = vmatprep.subr.mxu0 0.0
    %830 = vmatpush1.msra.mxu0 0.0
    %831 = vmatprep.subr.mxu0 0.0
    %832 = vmatpush1.msra.mxu0 0.0
    %833 = vmatprep.subr.mxu0 0.0
    %834 = vmatpush1.msra.mxu0 0.0
    %835 = vmatprep.subr.mxu0 0.0
    %836 = vmatpush1.msra.mxu0 0.0
    %837 = vmatprep.subr.mxu0 0.0
    %838 = vmatpush1.msra.mxu0 0.0
    %839 = vmatprep.subr.mxu0 0.0
    %840 = vmatpush1.msra.mxu0 0.0
    %841 = vmatprep.subr.mxu0 0.0
    %842 = vmatpush1.msra.mxu0 0.0
    %843 = vmatprep.subr.mxu0 0.0
    %844 = vmatpush1.msra.mxu0 0.0
    %845 = vmatprep.subr.mxu0 0.0
    %846 = vmatpush1.msra.mxu0 0.0
    %847 = vmatprep.subr.mxu0 0.0
    %848 = vmatpush1.msra.mxu0 0.0
    %849 = vmatprep.subr.mxu0 0.0
    %850 = vmatpush1.msra.mxu0 0.0
    %851 = vmatprep.subr.mxu0 0.0
    %852 = vmatpush1.msra.mxu0 0.0
    %853 = vmatprep.subr.mxu0 0.0
    %854 = vmatpush1.msra.mxu0 0.0
    %855 = vmatprep.subr.mxu0 0.0
    %856 = vmatpush1.msra.mxu0 0.0
    %857 = vmatprep.subr.mxu0 0.0
    %858 = vmatpush1.msra.mxu0 0.0
    %859 = vmatprep.subr.mxu0 0.0
    %860 = vmatpush1.msra.mxu0 0.0
    %861 = vmatprep.subr.mxu0 0.0
    %862 = vmatpush1.msra.mxu0 0.0
    %863 = vmatprep.subr.mxu0 0.0
    %864 = vmatpush1.msra.mxu0 0.0
    %865 = vmatprep.subr.mxu0 0.0
    %866 = vmatpush1.msra.mxu0 0.0
    %867 = vmatprep.mubr.f32.mxu0 0.0
    %868 = vmatmul.mubr.f32.gmra.mrb[0].mxu0 %v178
    %v869 = vpop.f32.mrb[0].mxu0
    %v870 = vadd.f32 0.0, %v869
    %v871 = vpop.f32.mrb[0].mxu0
    %872 = vdwg.mxu0
    %v873 = vmul.f32 %v799, 0.125
    %v874 = vmul.f32 %v870, 0.125
    %v875 = vmul.f32 %v873, %v873
    %v876 = vsub.f32 %v874, %v875
    %v877 = vmax.f32 %v876, 0.0
    %v878 = vld [vmem:[%s11] sm:$0x1]
    %v879 = vadd.f32 %v877, 1e-05
    %v880 = vrsqrt.pop %v879
    %v881 = vmul.f32 %v878, %v880
    %v882 = vld [vmem:[%s12] sm:$0x1]
    %v883 = vmul.f32 %v873, %v881
    %v884 = vsub.f32 %v882, %v883
    %v886 = vlaneseq
    %v887 = vshrl.u32 %v886, 7
    %v888 = vsub.s32 0, %v887
    %v889 = vrot.slane %v881, %v888
    %v891 = vmul.f32 %v727, %v889
    %v893 = vlaneseq
    %v894 = vshrl.u32 %v893, 7
    %v895 = vsub.s32 0, %v894
    %v896 = vrot.slane %v884, %v895
    %v898 = vadd.f32 %v891, %v896
    %v899 = vmul.f32 %v898, 0.5
    %v900 = vtanh.pop %v899
    %v901 = vadd.f32 %v900, 1.0
    %v902 = vmul.f32 %v901, 0.5
    %v903 = vpack.c.bf16 %v902, %v902
    %v904 = vld [vmem:[#allocation10] sm:$0xf]
    %v905 = vld [vmem:[#allocation10 + $0x4] sm:$0xf]
    %v906 = vld [vmem:[#allocation10 + $0x8] sm:$0xf]
    %v907 = vld [vmem:[#allocation10 + $0xc] sm:$0xf]
    %v908 = vld [vmem:[#allocation10 + $0x10] sm:$0xf]
    %v909 = vld [vmem:[#allocation10 + $0x14] sm:$0xf]
    %v910 = vld [vmem:[#allocation10 + $0x18] sm:$0xf]
    %v911 = vld [vmem:[#allocation10 + $0x1c] sm:$0xf]
    %v912 = vld [vmem:[#allocation10 + $0x20] sm:$0xf]
    %v913 = vld [vmem:[#allocation10 + $0x24] sm:$0xf]
    %v914 = vld [vmem:[#allocation10 + $0x28] sm:$0xf]
    %v915 = vld [vmem:[#allocation10 + $0x2c] sm:$0xf]
    %v916 = vld [vmem:[#allocation10 + $0x30] sm:$0xf]
    %v917 = vld [vmem:[#allocation10 + $0x34] sm:$0xf]
    %v918 = vld [vmem:[#allocation10 + $0x38] sm:$0xf]
    %v919 = vld [vmem:[#allocation10 + $0x3c] sm:$0xf]
    %v920 = vld [vmem:[%s14] sm:$0x1]
    %v922 = vlaneseq
    %v923 = vshrl.u32 %v922, 7
    %v924 = vsub.s32 0, %v923
    %v925 = vrot.slane %v920, %v924
    %v943 = vunpack.c.l.b16 %v904
    %v944 = vunpack.c.l.b16 %v905
    %v945 = vunpack.c.l.b16 %v906
    %v946 = vunpack.c.l.b16 %v907
    %v947 = vunpack.c.l.b16 %v908
    %v948 = vunpack.c.l.b16 %v909
    %v949 = vunpack.c.l.b16 %v910
    %v950 = vunpack.c.l.b16 %v911
    %v951 = vunpack.c.l.b16 %v912
    %v952 = vunpack.c.l.b16 %v913
    %v953 = vunpack.c.l.b16 %v914
    %v954 = vunpack.c.l.b16 %v915
    %v955 = vunpack.c.l.b16 %v916
    %v956 = vunpack.c.l.b16 %v917
    %v957 = vunpack.c.l.b16 %v918
    %v958 = vunpack.c.l.b16 %v919
    %v959 = vpack.c.b16 %v944, %v943
    %v960 = vpack.c.b16 %v946, %v945
    %v961 = vpack.c.b16 %v948, %v947
    %v962 = vpack.c.b16 %v950, %v949
    %v963 = vpack.c.b16 %v952, %v951
    %v964 = vpack.c.b16 %v954, %v953
    %v965 = vpack.c.b16 %v956, %v955
    %v966 = vpack.c.b16 %v958, %v957
    %975 = vmatprep.subr.bf16.mxu0 0
    %976 = vmatpush1.bf16.msra.mxu0 %v959
    %977 = vmatprep.subr.bf16.mxu0 0
    %978 = vmatpush1.bf16.msra.mxu0 %v960
    %979 = vmatprep.subr.bf16.mxu0 0
    %980 = vmatpush1.bf16.msra.mxu0 %v961
    %981 = vmatprep.subr.bf16.mxu0 0
    %982 = vmatpush1.bf16.msra.mxu0 %v962
    %983 = vmatprep.subr.bf16.mxu0 0
    %984 = vmatpush1.bf16.msra.mxu0 %v963
    %985 = vmatprep.subr.bf16.mxu0 0
    %986 = vmatpush1.bf16.msra.mxu0 %v964
    %987 = vmatprep.subr.bf16.mxu0 0
    %988 = vmatpush1.bf16.msra.mxu0 %v965
    %989 = vmatprep.subr.bf16.mxu0 0
    %990 = vmatpush1.bf16.msra.mxu0 %v966
    %991 = vmatprep.subr.bf16.mxu0 0
    %992 = vmatpush1.bf16.msra.mxu0 0
    %993 = vmatprep.subr.bf16.mxu0 0
    %994 = vmatpush1.bf16.msra.mxu0 0
    %995 = vmatprep.subr.bf16.mxu0 0
    %996 = vmatpush1.bf16.msra.mxu0 0
    %997 = vmatprep.subr.bf16.mxu0 0
    %998 = vmatpush1.bf16.msra.mxu0 0
    %999 = vmatprep.subr.bf16.mxu0 0
    %1000 = vmatpush1.bf16.msra.mxu0 0
    %1001 = vmatprep.subr.bf16.mxu0 0
    %1002 = vmatpush1.bf16.msra.mxu0 0
    %1003 = vmatprep.subr.bf16.mxu0 0
    %1004 = vmatpush1.bf16.msra.mxu0 0
    %1005 = vmatprep.subr.bf16.mxu0 0
    %1006 = vmatpush1.bf16.msra.mxu0 0
    %1007 = vmatprep.mubr.bf16.mxu0 0
    %1008 = vmatmul.mubr.bf16.gmra.mrb[0].mxu0 %v903
    %v1009 = vpop.f32.mrb[0].mxu0
    %v1010 = vadd.f32 %v925, %v1009
    %v1011 = vpop.f32.mrb[0].mxu0
    %v1012 = vpop.f32.mrb[0].mxu0
    %v1013 = vpop.f32.mrb[0].mxu0
    %1014 = vdwg.mxu0
    %v1015 = vmul.f32 %v1010, 0.5
    %v1016 = vtanh.pop %v1015
    %v1017 = vadd.f32 %v1016, 1.0
    %v1018 = vmul.f32 %v1017, 0.5
    %1019 = vst [vmem:[#allocation11] sm:$0xff] %v1018
    // Predicated region
    $region82: #{tpu_custom_call.1} parent=1 // pred_check
      _
    $region83: #{tpu_custom_call.1} parent=1 // pred_check_branch
      %1021 = sbr.rel (0) target = $region85
    $region84: #{tpu_custom_call.1} parent=1 // pred_region
      %s1023 = ssub.s32 128, 128
      %1024 = vsyncadd [#allocation4], %s1023
      %s1026 = sshll.u32 [#allocation11], 4
      %s1027 = int_to_ptr.vmem [resolvable:$true] %s1026
      %1029 = dma.vmem_to_hbm [thread:$0]  %s1027, 128, %s15, [#allocation4]
    $region85: #{tpu_custom_call.1} parent=1 // pred_fallthru
      _
    // Predicated region
    $region86: #{tpu_custom_call.1} parent=1 // pred_check
      _
    $region87: #{tpu_custom_call.1} parent=1 // pred_check_branch
      %1031 = sbr.rel (0) target = $region89
    $region88: #{tpu_custom_call.1} parent=1 // pred_region
      %1032 = dma.done [#allocation4], 128
    $region89: #{tpu_custom_call.1} parent=1 // pred_fallthru
      _
    %1033 = vsyncpa [#allocation3], 1
    %1034 = vsyncpa [#allocation6], 1
    %1035 = vsyncpa [#allocation9], 1
    %1036 = vsyncpa [#allocation4], 1

</llo_original>
